<compile_context>
chip_gen: v7x
topology: tpu7x:2x2x1
jax: 0.10.0
libtpu: 0.0.40
codegen_flags: <defaults>
</compile_context>

<pallas_src>
import jax
import jax.numpy as jnp
from jax.experimental import pallas as pl
from jax.experimental.pallas import tpu as pltpu


def _dqn_kernel(x_ref, w1_ref, b1_ref, w2_ref, b2_ref, out_ref):
    # fc1: (TB, D) @ (D, H) -> f32 accumulate, bias-add + ReLU in f32 (VPU).
    h = jnp.dot(x_ref[...], w1_ref[...], preferred_element_type=jnp.float32)
    h = jnp.maximum(h + b1_ref[...], 0.0)
    # fc2: (TB, H) @ (H, A_pad) -> f32 accumulate; operands match w2 dtype
    # (bf16 when the wrapper casts, f32 otherwise).
    a = jnp.dot(h.astype(w2_ref.dtype), w2_ref[...],
                preferred_element_type=jnp.float32)
    out_ref[...] = (a + b2_ref[...]).astype(out_ref.dtype)


def _round_up(n, m):
    return ((n + m - 1) // m) * m


def linear_dqn_forward(x, w1, b1, w2, b2, *, block_b=512, use_bf16=False):
    """Forward pass of LinearDeepQNetwork.

    x : (B, input_dims) float32
    w1: (input_dims, 128), b1: (1, 128)
    w2: (128, n_actions), b2: (1, n_actions)
    returns: (B, n_actions) float32

    block_b : batch tile (rows per grid step), capped to keep vreg/VMEM sane.
    use_bf16: cast matmul operands to bf16 (f32 accumulation); leave False for
              bit-faithful-to-f32 results (recommended on v5e).
    """
    B, D = x.shape
    H = w1.shape[1]
    A = w2.shape[1]

    # --- lane-dense output: pad fc2 output dim up to a multiple of 128 ------
    A_pad = _round_up(max(A, 128), 128)
    if A_pad != A:
        w2p = jnp.zeros((H, A_pad), w2.dtype).at[:, :A].set(w2)
        b2p = jnp.zeros((1, A_pad), b2.dtype).at[:, :A].set(b2)
    else:
        w2p, b2p = w2, b2

    # --- batch tiling: TB rows per grid step, pad B up to a multiple of TB --
    TB = min(block_b, max(B, 8))
    TB = _round_up(TB, 8)                  # sublane alignment
    B_pad = _round_up(B, TB)
    if B_pad != B:
        xp = jnp.zeros((B_pad, D), x.dtype).at[:B].set(x)
    else:
        xp = x

    # --- optional bf16 matmul operands (biases / tail stay f32) -------------
    compute_dtype = jnp.bfloat16 if use_bf16 else xp.dtype
    xp = xp.astype(compute_dtype)
    w1c = w1.astype(compute_dtype)
    w2c = w2p.astype(compute_dtype)
    b1c = b1.astype(jnp.float32)
    b2c = b2p.astype(jnp.float32)

    grid = (B_pad // TB,)
    out = pl.pallas_call(
        _dqn_kernel,
        out_shape=jax.ShapeDtypeStruct((B_pad, A_pad), jnp.float32),
        grid=grid,
        in_specs=[
            pl.BlockSpec((TB, D), lambda i: (i, 0)),        # x: streamed
            pl.BlockSpec((D, H), lambda i: (0, 0)),         # w1: resident
            pl.BlockSpec((1, H), lambda i: (0, 0)),         # b1: resident
            pl.BlockSpec((H, A_pad), lambda i: (0, 0)),     # w2: resident
            pl.BlockSpec((1, A_pad), lambda i: (0, 0)),     # b2: resident
        ],
        out_specs=pl.BlockSpec((TB, A_pad), lambda i: (i, 0)),
        compiler_params=pltpu.CompilerParams(
            dimension_semantics=("parallel",),   # megacore sharding on v7x
            vmem_limit_bytes=64 * 1024 * 1024,
        ),
    )(xp, w1c, b1c, w2c, b2c)

    return out[:B, :A]


def init_params(key, input_dims, n_actions, hidden=128):
    """Deterministic init mimicking PyTorch nn.Linear defaults
    (uniform(-1/sqrt(fan_in), 1/sqrt(fan_in)) for weight and bias)."""
    k1, k2, k3, k4 = jax.random.split(key, 4)
    bound1 = 1.0 / jnp.sqrt(jnp.float32(input_dims))
    bound2 = 1.0 / jnp.sqrt(jnp.float32(hidden))
    w1 = jax.random.uniform(k1, (input_dims, hidden), jnp.float32, -bound1, bound1)
    b1 = jax.random.uniform(k2, (1, hidden), jnp.float32, -bound1, bound1)
    w2 = jax.random.uniform(k3, (hidden, n_actions), jnp.float32, -bound2, bound2)
    b2 = jax.random.uniform(k4, (1, n_actions), jnp.float32, -bound2, bound2)
    return w1, b1, w2, b2


def _reference(x, w1, b1, w2, b2):
    return jnp.maximum(x @ w1 + b1, 0.0) @ w2 + b2


if __name__ == "__main__":
    key = jax.random.PRNGKey(0)
    k_params, k_x1, k_x2 = jax.random.split(key, 3)

    input_dims = 8     # small state vector (CartPole-like)
    n_actions = 4
    w1, b1, w2, b2 = init_params(k_params, input_dims, n_actions)

    # --- small single-tile case (B=8, grid=(1,)) ----------------------------
    x_small = jax.random.normal(k_x1, (8, input_dims), jnp.float32)
    out_small = jax.block_until_ready(linear_dqn_forward(x_small, w1, b1, w2, b2))
    ref_small = _reference(x_small, w1, b1, w2, b2)
    assert out_small.shape == (8, n_actions)
    assert jnp.allclose(out_small, ref_small, atol=1e-5, rtol=1e-5)

    # --- multi-tile case exercising batch tiling + padding (grid=(2,)) ------
    x_big = jax.random.normal(k_x2, (600, input_dims), jnp.float32)
    out_big = jax.block_until_ready(linear_dqn_forward(x_big, w1, b1, w2, b2))
    ref_big = _reference(x_big, w1, b1, w2, b2)
    assert out_big.shape == (600, n_actions)
    assert jnp.allclose(out_big, ref_big, atol=1e-5, rtol=1e-5)

    print("KERNEL_OK")
</pallas_src>

<mosaic_0001>
module attributes {stable_mosaic.version = 11 : i64} {
  func.func @_dqn_kernel(%arg0: i32, %arg1: memref<8x8xf32, #tpu.memory_space<vmem>>, %arg2: memref<8x128xf32, #tpu.memory_space<vmem>>, %arg3: memref<1x128xf32, #tpu.memory_space<vmem>>, %arg4: memref<128x128xf32, #tpu.memory_space<vmem>>, %arg5: memref<1x128xf32, #tpu.memory_space<vmem>>, %arg6: memref<8x128xf32, #tpu.memory_space<vmem>>) attributes {dimension_semantics = [#tpu.dimension_semantics<parallel>], iteration_bounds = array<i64: 1>, scalar_prefetch = 0 : i64, scratch_operands = 0 : i64, tpu.core_type = #tpu.core_type<tc>, window_params = [{transform_indices = @transform_0, window_bounds = array<i64: 8, 8>}, {pipeline_mode = #tpu.pipeline_mode<synchronous>, transform_indices = @transform_1, window_bounds = array<i64: 8, 128>}, {pipeline_mode = #tpu.pipeline_mode<synchronous>, transform_indices = @transform_2, window_bounds = array<i64: 1, 128>}, {pipeline_mode = #tpu.pipeline_mode<synchronous>, transform_indices = @transform_3, window_bounds = array<i64: 128, 128>}, {pipeline_mode = #tpu.pipeline_mode<synchronous>, transform_indices = @transform_4, window_bounds = array<i64: 1, 128>}, {transform_indices = @transform_5, window_bounds = array<i64: 8, 128>}]} {
    %c0 = arith.constant 0 : index
    %c0_0 = arith.constant 0 : index
    %0 = vector.load %arg1[%c0, %c0_0] : memref<8x8xf32, #tpu.memory_space<vmem>>, vector<8x8xf32>
    %c0_1 = arith.constant 0 : index
    %c0_2 = arith.constant 0 : index
    %1 = vector.load %arg2[%c0_1, %c0_2] : memref<8x128xf32, #tpu.memory_space<vmem>>, vector<8x128xf32>
    %cst = arith.constant dense<0.000000e+00> : vector<8x128xf32>
    %2 = tpu.matmul %0, %1, %cst {dimension_numbers = #tpu.dot_dimension_numbers<[1], [0], [0], [1], [0, 0, 1, 1], [], []>} : vector<8x8xf32>, vector<8x128xf32>, vector<8x128xf32> -> vector<8x128xf32>
    %c0_3 = arith.constant 0 : index
    %c0_4 = arith.constant 0 : index
    %3 = vector.load %arg3[%c0_3, %c0_4] : memref<1x128xf32, #tpu.memory_space<vmem>>, vector<1x128xf32>
    %4 = vector.broadcast %3 : vector<1x128xf32> to vector<8x128xf32>
    %5 = arith.addf %2, %4 : vector<8x128xf32>
    %cst_5 = arith.constant 0.000000e+00 : f32
    %6 = vector.broadcast %cst_5 : f32 to vector<8x128xf32>
    %7 = arith.maximumf %5, %6 : vector<8x128xf32>
    %c0_6 = arith.constant 0 : index
    %c0_7 = arith.constant 0 : index
    %8 = vector.load %arg4[%c0_6, %c0_7] : memref<128x128xf32, #tpu.memory_space<vmem>>, vector<128x128xf32>
    %cst_8 = arith.constant dense<0.000000e+00> : vector<8x128xf32>
    %9 = tpu.matmul %7, %8, %cst_8 {dimension_numbers = #tpu.dot_dimension_numbers<[1], [0], [0], [1], [0, 0, 1, 1], [], []>} : vector<8x128xf32>, vector<128x128xf32>, vector<8x128xf32> -> vector<8x128xf32>
    %c0_9 = arith.constant 0 : index
    %c0_10 = arith.constant 0 : index
    %10 = vector.load %arg5[%c0_9, %c0_10] : memref<1x128xf32, #tpu.memory_space<vmem>>, vector<1x128xf32>
    %11 = vector.broadcast %10 : vector<1x128xf32> to vector<8x128xf32>
    %12 = arith.addf %9, %11 : vector<8x128xf32>
    %c0_11 = arith.constant 0 : index
    %c0_12 = arith.constant 0 : index
    %13 = vector.load %arg6[%c0_11, %c0_12] : memref<8x128xf32, #tpu.memory_space<vmem>>, vector<8x128xf32>
    tpu.vector_store %arg6[%c0_11, %c0_12], %12 {strides = array<i32>} : memref<8x128xf32, #tpu.memory_space<vmem>>, vector<8x128xf32>,
    return
  }
  func.func @transform_0(%arg0: i32) -> (i32, i32) {
    %c0_i32 = arith.constant 0 : i32
    %c0_i32_0 = arith.constant 0 : i32
    return %arg0, %c0_i32 : i32, i32
  }
  func.func @transform_1(%arg0: i32) -> (i32, i32) {
    %c0_i32 = arith.constant 0 : i32
    %c0_i32_0 = arith.constant 0 : i32
    %c0_i32_1 = arith.constant 0 : i32
    return %c0_i32, %c0_i32_0 : i32, i32
  }
  func.func @transform_2(%arg0: i32) -> (i32, i32) {
    %c0_i32 = arith.constant 0 : i32
    %c0_i32_0 = arith.constant 0 : i32
    %c0_i32_1 = arith.constant 0 : i32
    return %c0_i32, %c0_i32_0 : i32, i32
  }
  func.func @transform_3(%arg0: i32) -> (i32, i32) {
    %c0_i32 = arith.constant 0 : i32
    %c0_i32_0 = arith.constant 0 : i32
    %c0_i32_1 = arith.constant 0 : i32
    return %c0_i32, %c0_i32_0 : i32, i32
  }
  func.func @transform_4(%arg0: i32) -> (i32, i32) {
    %c0_i32 = arith.constant 0 : i32
    %c0_i32_0 = arith.constant 0 : i32
    %c0_i32_1 = arith.constant 0 : i32
    return %c0_i32, %c0_i32_0 : i32, i32
  }
  func.func @transform_5(%arg0: i32) -> (i32, i32) {
    %c0_i32 = arith.constant 0 : i32
    %c0_i32_0 = arith.constant 0 : i32
    return %arg0, %c0_i32 : i32, i32
  }
}

</mosaic_0001>

<llo_original>
// kernel: tpu_custom_call.1
$region0: #{tpu_custom_call.1}
  #allocation0 [shape = 'u32[]', space=smem, size = 0x4, offset = 0x4, fixed_abs, tag = 'smem constant byte address 0x4 - core index']
  #allocation1 [shape = 'u32[144,128]{1,0:T(1,128)}', space=vmem, size = 0x12000, scoped, tag = 'internal scratch']
  %s0 = inlined_call_operand.hbm [shape: f32[8,8], index: 0, kind: input, shape index: {}]
  %s1 = inlined_call_operand.hbm [shape: f32[8,128], index: 1, kind: input, shape index: {}]
  %s2 = inlined_call_operand.hbm [shape: f32[1,128], index: 2, kind: input, shape index: {}]
  %s3 = inlined_call_operand.hbm [shape: f32[128,128], index: 3, kind: input, shape index: {}]
  %s4 = inlined_call_operand.hbm [shape: f32[1,128], index: 4, kind: input, shape index: {}]
  %s5 = inlined_call_operand.hbm [shape: f32[8,128], index: 5, kind: output, shape index: {}]
  %s6 = sld [smem:[#allocation0]]
  $region50: #{tpu_custom_call.1} parent=0
    _
  %s8 = ssub.s32 1, %s6
  %s9 = scalar_select 0, %s8, %s6
  $region1: #{tpu_custom_call.1} parent=0
    #allocation2 [shape = 'u8[4096]{0}', space=vmem, size = 0x1000, scoped, tag = 'input window, operand 0, single buffered']
    #allocation3 [shape = 's32[1]{0}', space=sflag, size = 0x4, scoped, tag = 'scoped memory for tpu_custom_call.1']
    #allocation4 [shape = 's32[1]{0}', space=sflag, size = 0x4, scoped, tag = 'scoped memory for tpu_custom_call.1']
    #allocation5 [shape = 'u8[4096]{0}', space=vmem, size = 0x1000, scoped, tag = 'input window, operand 1, single buffered']
    #allocation6 [shape = 's32[1]{0}', space=sflag, size = 0x4, scoped, tag = 'scoped memory for tpu_custom_call.1']
    #allocation7 [shape = 'u8[512]{0}', space=vmem, size = 0x400, scoped, tag = 'input window, operand 2, single buffered']
    #allocation8 [shape = 'u8[65536]{0}', space=vmem, size = 0x10000, scoped, tag = 'input window, operand 3, single buffered']
    #allocation9 [shape = 's32[1]{0}', space=sflag, size = 0x4, scoped, tag = 'scoped memory for tpu_custom_call.1']
    #allocation10 [shape = 'u8[512]{0}', space=vmem, size = 0x400, scoped, tag = 'input window, operand 4, single buffered']
    #allocation11 [shape = 'u8[4096]{0}', space=vmem, size = 0x1000, scoped, tag = 'output window, operand 0, single buffered']
    %10 = vsyncpa [#allocation3], 0
    %11 = vsyncpa [#allocation6], 0
    %12 = vsyncpa [#allocation9], 0
    %13 = vsyncpa [#allocation4], 0
    // Predicated region
    $region2: #{tpu_custom_call.1} parent=1 // pred_check
      _
    $region3: #{tpu_custom_call.1} parent=1 // pred_check_branch
      %15 = sbr.rel (0) target = $region5
    $region4: #{tpu_custom_call.1} parent=1 // pred_region
      %s17 = ssub.s32 128, 128
      %18 = vsyncadd [#allocation3], %s17
      %s20 = sshll.u32 [#allocation2], 4
      %s21 = int_to_ptr.vmem [resolvable:$true] %s20
      %23 = dma.hbm_to_vmem [thread:$0]  %s0, 128, %s21, [#allocation3]
    $region5: #{tpu_custom_call.1} parent=1 // pred_fallthru
      _
    // Predicated region
    $region6: #{tpu_custom_call.1} parent=1 // pred_check
      _
    $region7: #{tpu_custom_call.1} parent=1 // pred_check_branch
      %25 = sbr.rel (0) target = $region9
    $region8: #{tpu_custom_call.1} parent=1 // pred_region
      %s27 = ssub.s32 128, 128
      %28 = vsyncadd [#allocation6], %s27
      %s30 = sshll.u32 [#allocation5], 4
      %s31 = int_to_ptr.vmem [resolvable:$true] %s30
      %33 = dma.hbm_to_vmem [thread:$0]  %s1, 128, %s31, [#allocation6]
    $region9: #{tpu_custom_call.1} parent=1 // pred_fallthru
      _
    // Predicated region
    $region10: #{tpu_custom_call.1} parent=1 // pred_check
      _
    $region11: #{tpu_custom_call.1} parent=1 // pred_check_branch
      %35 = sbr.rel (0) target = $region13
    $region12: #{tpu_custom_call.1} parent=1 // pred_region
      %s37 = ssub.s32 16, 16
      %38 = vsyncadd [#allocation6], %s37
      %s40 = sshll.u32 [#allocation7], 4
      %s41 = int_to_ptr.vmem [resolvable:$true] %s40
      %43 = dma.hbm_to_vmem [thread:$0]  %s2, 16, %s41, [#allocation6]
    $region13: #{tpu_custom_call.1} parent=1 // pred_fallthru
      _
    // Predicated region
    $region14: #{tpu_custom_call.1} parent=1 // pred_check
      _
    $region15: #{tpu_custom_call.1} parent=1 // pred_check_branch
      %45 = sbr.rel (0) target = $region17
    $region16: #{tpu_custom_call.1} parent=1 // pred_region
      %s47 = ssub.s32 2048, 2048
      %48 = vsyncadd [#allocation9], %s47
      %s49 = sshll.u32 [#allocation8], 4
      %s50 = int_to_ptr.vmem [resolvable:$true] %s49
      %55 = dma.hbm_to_vmem [thread:$0]  %s3, 2048, %s50, [#allocation9], 128, 128, 8
    $region17: #{tpu_custom_call.1} parent=1 // pred_fallthru
      _
    // Predicated region
    $region18: #{tpu_custom_call.1} parent=1 // pred_check
      _
    $region19: #{tpu_custom_call.1} parent=1 // pred_check_branch
      %57 = sbr.rel (0) target = $region21
    $region20: #{tpu_custom_call.1} parent=1 // pred_region
      %s59 = ssub.s32 16, 16
      %60 = vsyncadd [#allocation9], %s59
      %s62 = sshll.u32 [#allocation10], 4
      %s63 = int_to_ptr.vmem [resolvable:$true] %s62
      %65 = dma.hbm_to_vmem [thread:$0]  %s4, 16, %s63, [#allocation9]
    $region21: #{tpu_custom_call.1} parent=1 // pred_fallthru
      _
    // Predicated region
    $region22: #{tpu_custom_call.1} parent=1 // pred_check
      _
    $region23: #{tpu_custom_call.1} parent=1 // pred_check_branch
      %67 = sbr.rel (0) target = $region25
    $region24: #{tpu_custom_call.1} parent=1 // pred_region
      %68 = dma.done [#allocation3], 128
    $region25: #{tpu_custom_call.1} parent=1 // pred_fallthru
      _
    // Predicated region
    $region26: #{tpu_custom_call.1} parent=1 // pred_check
      _
    $region27: #{tpu_custom_call.1} parent=1 // pred_check_branch
      %70 = sbr.rel (0) target = $region29
    $region28: #{tpu_custom_call.1} parent=1 // pred_region
      %71 = dma.done [#allocation6], 128
    $region29: #{tpu_custom_call.1} parent=1 // pred_fallthru
      _
    // Predicated region
    $region30: #{tpu_custom_call.1} parent=1 // pred_check
      _
    $region31: #{tpu_custom_call.1} parent=1 // pred_check_branch
      %73 = sbr.rel (0) target = $region33
    $region32: #{tpu_custom_call.1} parent=1 // pred_region
      %74 = dma.done [#allocation6], 16
    $region33: #{tpu_custom_call.1} parent=1 // pred_fallthru
      _
    // Predicated region
    $region34: #{tpu_custom_call.1} parent=1 // pred_check
      _
    $region35: #{tpu_custom_call.1} parent=1 // pred_check_branch
      %76 = sbr.rel (0) target = $region37
    $region36: #{tpu_custom_call.1} parent=1 // pred_region
      %77 = dma.done [#allocation9], 2048
    $region37: #{tpu_custom_call.1} parent=1 // pred_fallthru
      _
    // Predicated region
    $region38: #{tpu_custom_call.1} parent=1 // pred_check
      _
    $region39: #{tpu_custom_call.1} parent=1 // pred_check_branch
      %79 = sbr.rel (0) target = $region41
    $region40: #{tpu_custom_call.1} parent=1 // pred_region
      %80 = dma.done [#allocation9], 16
    $region41: #{tpu_custom_call.1} parent=1 // pred_fallthru
      _
    %v81 = vld [vmem:[#allocation2] sm:$0xff]
    %v82 = vld [vmem:[#allocation5] sm:$0xff]
    %v83 = vld [vmem:[#allocation7] sm:$0x1]
    %v85 = vlaneseq
    %v86 = vshrl.u32 %v85, 7
    %v87 = vsub.s32 0, %v86
    %v88 = vrot.slane %v83, %v87
    %vm90 = vcmask 64512
    %v92 = vsel %vm90, %v81, 0
    %94 = vmatprep.subr.mxu0 0.0
    %95 = vmatpush1.msra.mxu0 %v82
    %96 = vmatprep.subr.mxu0 0.0
    %97 = vmatpush1.msra.mxu0 0.0
    %98 = vmatprep.subr.mxu0 0.0
    %99 = vmatpush1.msra.mxu0 0.0
    %100 = vmatprep.subr.mxu0 0.0
    %101 = vmatpush1.msra.mxu0 0.0
    %102 = vmatprep.subr.mxu0 0.0
    %103 = vmatpush1.msra.mxu0 0.0
    %104 = vmatprep.subr.mxu0 0.0
    %105 = vmatpush1.msra.mxu0 0.0
    %106 = vmatprep.subr.mxu0 0.0
    %107 = vmatpush1.msra.mxu0 0.0
    %108 = vmatprep.subr.mxu0 0.0
    %109 = vmatpush1.msra.mxu0 0.0
    %110 = vmatprep.subr.mxu0 0.0
    %111 = vmatpush1.msra.mxu0 0.0
    %112 = vmatprep.subr.mxu0 0.0
    %113 = vmatpush1.msra.mxu0 0.0
    %114 = vmatprep.subr.mxu0 0.0
    %115 = vmatpush1.msra.mxu0 0.0
    %116 = vmatprep.subr.mxu0 0.0
    %117 = vmatpush1.msra.mxu0 0.0
    %118 = vmatprep.subr.mxu0 0.0
    %119 = vmatpush1.msra.mxu0 0.0
    %120 = vmatprep.subr.mxu0 0.0
    %121 = vmatpush1.msra.mxu0 0.0
    %122 = vmatprep.subr.mxu0 0.0
    %123 = vmatpush1.msra.mxu0 0.0
    %124 = vmatprep.subr.mxu0 0.0
    %125 = vmatpush1.msra.mxu0 0.0
    %126 = vmatprep.subr.mxu0 0.0
    %127 = vmatpush1.msra.mxu0 0.0
    %128 = vmatprep.subr.mxu0 0.0
    %129 = vmatpush1.msra.mxu0 0.0
    %130 = vmatprep.subr.mxu0 0.0
    %131 = vmatpush1.msra.mxu0 0.0
    %132 = vmatprep.subr.mxu0 0.0
    %133 = vmatpush1.msra.mxu0 0.0
    %134 = vmatprep.subr.mxu0 0.0
    %135 = vmatpush1.msra.mxu0 0.0
    %136 = vmatprep.subr.mxu0 0.0
    %137 = vmatpush1.msra.mxu0 0.0
    %138 = vmatprep.subr.mxu0 0.0
    %139 = vmatpush1.msra.mxu0 0.0
    %140 = vmatprep.subr.mxu0 0.0
    %141 = vmatpush1.msra.mxu0 0.0
    %142 = vmatprep.subr.mxu0 0.0
    %143 = vmatpush1.msra.mxu0 0.0
    %144 = vmatprep.subr.mxu0 0.0
    %145 = vmatpush1.msra.mxu0 0.0
    %146 = vmatprep.subr.mxu0 0.0
    %147 = vmatpush1.msra.mxu0 0.0
    %148 = vmatprep.subr.mxu0 0.0
    %149 = vmatpush1.msra.mxu0 0.0
    %150 = vmatprep.subr.mxu0 0.0
    %151 = vmatpush1.msra.mxu0 0.0
    %152 = vmatprep.subr.mxu0 0.0
    %153 = vmatpush1.msra.mxu0 0.0
    %154 = vmatprep.subr.mxu0 0.0
    %155 = vmatpush1.msra.mxu0 0.0
    %156 = vmatprep.subr.mxu0 0.0
    %157 = vmatpush1.msra.mxu0 0.0
    %158 = vmatprep.mubr.f32.mxu0 0.0
    %159 = vmatmul.mubr.f32.gmra.mrb[0].mxu0 %v92
    %v160 = vpop.f32.mrb[0].mxu0
    %v161 = vadd.f32 %v88, %v160
    %v162 = vpop.f32.mrb[0].mxu0
    %163 = vdwg.mxu0
    %v164 = vmax.f32 %v161, 0.0
    %v165 = vld [vmem:[#allocation8] sm:$0xff]
    %v166 = vld [vmem:[#allocation8 + $0x8] sm:$0xff]
    %v167 = vld [vmem:[#allocation8 + $0x10] sm:$0xff]
    %v168 = vld [vmem:[#allocation8 + $0x18] sm:$0xff]
    %v169 = vld [vmem:[#allocation8 + $0x20] sm:$0xff]
    %v170 = vld [vmem:[#allocation8 + $0x28] sm:$0xff]
    %v171 = vld [vmem:[#allocation8 + $0x30] sm:$0xff]
    %v172 = vld [vmem:[#allocation8 + $0x38] sm:$0xff]
    %v173 = vld [vmem:[#allocation8 + $0x40] sm:$0xff]
    %v174 = vld [vmem:[#allocation8 + $0x48] sm:$0xff]
    %v175 = vld [vmem:[#allocation8 + $0x50] sm:$0xff]
    %v176 = vld [vmem:[#allocation8 + $0x58] sm:$0xff]
    %v177 = vld [vmem:[#allocation8 + $0x60] sm:$0xff]
    %v178 = vld [vmem:[#allocation8 + $0x68] sm:$0xff]
    %v179 = vld [vmem:[#allocation8 + $0x70] sm:$0xff]
    %v180 = vld [vmem:[#allocation8 + $0x78] sm:$0xff]
    %v181 = vld [vmem:[#allocation10] sm:$0x1]
    %v183 = vlaneseq
    %v184 = vshrl.u32 %v183, 7
    %v185 = vsub.s32 0, %v184
    %v186 = vrot.slane %v181, %v185
    %188 = vmatprep.subr.mxu0 0.0
    %189 = vmatpush1.msra.mxu0 %v165
    %190 = vmatprep.subr.mxu0 0.0
    %191 = vmatpush1.msra.mxu0 %v166
    %192 = vmatprep.subr.mxu0 0.0
    %193 = vmatpush1.msra.mxu0 %v167
    %194 = vmatprep.subr.mxu0 0.0
    %195 = vmatpush1.msra.mxu0 %v168
    %196 = vmatprep.subr.mxu0 0.0
    %197 = vmatpush1.msra.mxu0 %v169
    %198 = vmatprep.subr.mxu0 0.0
    %199 = vmatpush1.msra.mxu0 %v170
    %200 = vmatprep.subr.mxu0 0.0
    %201 = vmatpush1.msra.mxu0 %v171
    %202 = vmatprep.subr.mxu0 0.0
    %203 = vmatpush1.msra.mxu0 %v172
    %204 = vmatprep.subr.mxu0 0.0
    %205 = vmatpush1.msra.mxu0 %v173
    %206 = vmatprep.subr.mxu0 0.0
    %207 = vmatpush1.msra.mxu0 %v174
    %208 = vmatprep.subr.mxu0 0.0
    %209 = vmatpush1.msra.mxu0 %v175
    %210 = vmatprep.subr.mxu0 0.0
    %211 = vmatpush1.msra.mxu0 %v176
    %212 = vmatprep.subr.mxu0 0.0
    %213 = vmatpush1.msra.mxu0 %v177
    %214 = vmatprep.subr.mxu0 0.0
    %215 = vmatpush1.msra.mxu0 %v178
    %216 = vmatprep.subr.mxu0 0.0
    %217 = vmatpush1.msra.mxu0 %v179
    %218 = vmatprep.subr.mxu0 0.0
    %219 = vmatpush1.msra.mxu0 %v180
    %220 = vmatprep.subr.mxu0 0.0
    %221 = vmatpush1.msra.mxu0 0.0
    %222 = vmatprep.subr.mxu0 0.0
    %223 = vmatpush1.msra.mxu0 0.0
    %224 = vmatprep.subr.mxu0 0.0
    %225 = vmatpush1.msra.mxu0 0.0
    %226 = vmatprep.subr.mxu0 0.0
    %227 = vmatpush1.msra.mxu0 0.0
    %228 = vmatprep.subr.mxu0 0.0
    %229 = vmatpush1.msra.mxu0 0.0
    %230 = vmatprep.subr.mxu0 0.0
    %231 = vmatpush1.msra.mxu0 0.0
    %232 = vmatprep.subr.mxu0 0.0
    %233 = vmatpush1.msra.mxu0 0.0
    %234 = vmatprep.subr.mxu0 0.0
    %235 = vmatpush1.msra.mxu0 0.0
    %236 = vmatprep.subr.mxu0 0.0
    %237 = vmatpush1.msra.mxu0 0.0
    %238 = vmatprep.subr.mxu0 0.0
    %239 = vmatpush1.msra.mxu0 0.0
    %240 = vmatprep.subr.mxu0 0.0
    %241 = vmatpush1.msra.mxu0 0.0
    %242 = vmatprep.subr.mxu0 0.0
    %243 = vmatpush1.msra.mxu0 0.0
    %244 = vmatprep.subr.mxu0 0.0
    %245 = vmatpush1.msra.mxu0 0.0
    %246 = vmatprep.subr.mxu0 0.0
    %247 = vmatpush1.msra.mxu0 0.0
    %248 = vmatprep.subr.mxu0 0.0
    %249 = vmatpush1.msra.mxu0 0.0
    %250 = vmatprep.subr.mxu0 0.0
    %251 = vmatpush1.msra.mxu0 0.0
    %252 = vmatprep.mubr.f32.mxu0 0.0
    %253 = vmatmul.mubr.f32.gmra.mrb[0].mxu0 %v164
    %v254 = vpop.f32.mrb[0].mxu0
    %v255 = vadd.f32 %v186, %v254
    %v256 = vpop.f32.mrb[0].mxu0
    %257 = vdwg.mxu0
    %258 = vst [vmem:[#allocation11] sm:$0xff] %v255
    // Predicated region
    $region42: #{tpu_custom_call.1} parent=1 // pred_check
      _
    $region43: #{tpu_custom_call.1} parent=1 // pred_check_branch
      %260 = sbr.rel (0) target = $region45
    $region44: #{tpu_custom_call.1} parent=1 // pred_region
      %s262 = ssub.s32 128, 128
      %263 = vsyncadd [#allocation4], %s262
      %s265 = sshll.u32 [#allocation11], 4
      %s266 = int_to_ptr.vmem [resolvable:$true] %s265
      %268 = dma.vmem_to_hbm [thread:$0]  %s266, 128, %s5, [#allocation4]
    $region45: #{tpu_custom_call.1} parent=1 // pred_fallthru
      _
    // Predicated region
    $region46: #{tpu_custom_call.1} parent=1 // pred_check
      _
    $region47: #{tpu_custom_call.1} parent=1 // pred_check_branch
      %270 = sbr.rel (0) target = $region49
    $region48: #{tpu_custom_call.1} parent=1 // pred_region
      %271 = dma.done [#allocation4], 128
    $region49: #{tpu_custom_call.1} parent=1 // pred_fallthru
      _
    %272 = vsyncpa [#allocation3], 1
    %273 = vsyncpa [#allocation6], 1
    %274 = vsyncpa [#allocation9], 1
    %275 = vsyncpa [#allocation4], 1

</llo_original>
